<compile_context>
chip_gen: v5e
topology: v5e:2x2
jax: 0.10.0
libtpu: 0.0.40
codegen_flags: <defaults>
</compile_context>

<pallas_src>
import functools

import jax
import jax.numpy as jnp
from jax.experimental import pallas as pl
from jax.experimental.pallas import tpu as pltpu


def _round_up(x, m):
    return ((x + m - 1) // m) * m


def _cdiv(a, b):
    return (a + b - 1) // b


_ACTIVATIONS = {
    "tanh": jnp.tanh,
    "relu": lambda x: jnp.maximum(x, 0.0),
    "elu": jax.nn.elu,
    "identity": lambda x: x,
}


def _make_kernel(n_hidden, act_fn):
    """Kernel over refs: (obs, [w_i, b_i]*n_hidden, w_head_row, b_head_smem, out)."""

    def kernel(*refs):
        obs_ref = refs[0]
        out_ref = refs[-1]
        x = obs_ref[...]                       # [tile_b, obs_dim]
        idx = 1
        for _ in range(n_hidden):
            w = refs[idx][...]                 # [d_in, d_out], VMEM-resident
            b = refs[idx + 1][...]             # [1, d_out],   VMEM-resident
            idx += 2
            x = act_fn(jnp.dot(x, w, preferred_element_type=jnp.float32) + b)
        w_head = refs[idx][...]                # [1, h_last] row, VMEM-resident
        b_head = refs[idx + 1]                 # (1, 1) SMEM scalar
        # Lane-dense value head, written as a (1, tile_b) row:
        #   v_row[0, j] = sum_k w_head[0, k] * x[j, k]  == (x @ w3 + b3)[j, 0]
        # TODO(synk): per perf review, verify via a bundle/MLIR dump that this
        # rhs-contracted dot_general does not materialize a full XLU transpose
        # of x at large tile_b; if it does, switch to jnp.dot(x, w3_col) + a
        # cheap (tile_b,1)->(1,tile_b) relayout.
        v_row = jax.lax.dot_general(
            w_head, x,
            dimension_numbers=(((1,), (1,)), ((), ())),
            preferred_element_type=jnp.float32)
        out_ref[...] = (v_row + b_head[0, 0]).astype(out_ref.dtype)

    return kernel


def _batch_tiling(B, obs_dim, hidden_dims):
    """Pick (tile_b, b_pad, grid) under a VMEM budget, keeping >=2 (even) grid
    steps whenever the 128-rounded batch allows (v7x megacore sharding)."""
    lane = lambda d: _round_up(max(int(d), 1), 128)
    # Approx. per-row f32 VMEM cost: double-buffered obs block + lane-padded
    # hidden (pre)activations + slack for the output row.
    row_bytes = 4 * (2 * lane(obs_dim) + sum(2 * lane(h) for h in hidden_dims) + 128)
    budget = 32 * 1024 * 1024
    cap_rows = min(8192, max(128, (budget // row_bytes) // 128 * 128))

    b128 = _round_up(B, 128)
    m = b128 // 128
    n_steps = _cdiv(b128, cap_rows)
    if m >= 2:
        n_steps = max(n_steps, 2)
        if n_steps % 2:            # even split across v7x's two TensorCores
            n_steps += 1
    tile_b = _round_up(_cdiv(b128, n_steps), 128)
    b_pad = _round_up(b128, tile_b)
    return tile_b, b_pad, b_pad // tile_b


@functools.partial(jax.jit, static_argnames=("activation",))
def mlp_critic_forward(obs, params, activation="tanh"):
    """Pallas forward for MLPCritic: returns v of shape [B], float32.

    obs:    [B, obs_dim].
    params: list of (w, b) per linear layer; w stored [in, out] (transpose of
            torch nn.Linear.weight), b [1, out]; last layer has out == 1.
    """
    act_fn = _ACTIVATIONS[activation]
    B, obs_dim = obs.shape
    *hidden_layers, (w_head, b_head) = [(w, b) for (w, b) in params]
    hidden_dims = [w.shape[1] for (w, _) in hidden_layers]
    h_last = w_head.shape[0]

    tile_b, b_pad, grid_b = _batch_tiling(B, obs_dim, hidden_dims)
    if b_pad != B:
        obs = jnp.pad(obs, ((0, b_pad - B), (0, 0)))   # padded rows independent; sliced off

    # Value-head weight as a lane-dense [1, h_last] row; bias as an SMEM scalar
    # (avoids wasting a padded (8,128) VMEM tile).
    w_head_row = w_head.reshape(1, h_last)
    b_head_s = b_head.reshape(1, 1)

    in_specs = [pl.BlockSpec((tile_b, obs_dim), lambda i: (i, 0))]   # obs: tiled, pipelined
    operands = [obs]
    for (w, b) in hidden_layers:
        in_specs.append(pl.BlockSpec(w.shape, lambda i: (0, 0)))     # weight: resident
        in_specs.append(pl.BlockSpec(b.shape, lambda i: (0, 0)))     # bias:   resident
        operands += [w, b]
    in_specs.append(pl.BlockSpec((1, h_last), lambda i: (0, 0)))     # head row: resident
    in_specs.append(pl.BlockSpec(memory_space=pltpu.MemorySpace.SMEM))  # head bias: SMEM
    operands += [w_head_row, b_head_s]
    # Note: constant-index weight blocks are fetched once; their default double
    # buffer costs <64 KiB here, so pl.Buffered(1) was intentionally skipped.

    out = pl.pallas_call(
        _make_kernel(len(hidden_layers), act_fn),
        out_shape=jax.ShapeDtypeStruct((1, b_pad), jnp.float32),
        grid_spec=pltpu.PrefetchScalarGridSpec(
            num_scalar_prefetch=0,
            grid=(grid_b,),
            in_specs=in_specs,
            out_specs=pl.BlockSpec((1, tile_b), lambda i: (0, i)),   # lane-dense output row
        ),
        compiler_params=pltpu.CompilerParams(
            dimension_semantics=("parallel",),
            vmem_limit_bytes=48 * 1024 * 1024,
        ),
    )(*operands)

    # torch.squeeze(v_net(obs), -1) -> [B]
    return out[0, :B]


def init_params(key, obs_dim, hidden_sizes):
    """nn.Linear-style U(-1/sqrt(fan_in), 1/sqrt(fan_in)) init; weights stored
    [in, out] (transposed vs torch's [out, in]); returns list of (w, b)."""
    sizes = [obs_dim] + list(hidden_sizes) + [1]
    params = []
    for j in range(len(sizes) - 1):
        fan_in, fan_out = sizes[j], sizes[j + 1]
        key, kw, kb = jax.random.split(key, 3)
        bound = 1.0 / (fan_in ** 0.5)
        w = jax.random.uniform(kw, (fan_in, fan_out), jnp.float32,
                               minval=-bound, maxval=bound)
        b = jax.random.uniform(kb, (1, fan_out), jnp.float32,
                               minval=-bound, maxval=bound)
        params.append((w, b))
    return params


def reference_forward(obs, params, activation="tanh"):
    act_fn = _ACTIVATIONS[activation]
    x = obs
    for (w, b) in params[:-1]:
        x = act_fn(x @ w + b)
    w_head, b_head = params[-1]
    v = x @ w_head + b_head
    return jnp.squeeze(v, axis=-1)


if __name__ == "__main__":
    key = jax.random.PRNGKey(0)

    # Test 1: small rollout-style batch (single grid step), tanh activation.
    B1, obs_dim1, hidden1 = 8, 16, (32, 32)
    key, k_obs1, k_p1 = jax.random.split(key, 3)
    obs1 = jax.random.normal(k_obs1, (B1, obs_dim1), jnp.float32)
    params1 = init_params(k_p1, obs_dim1, hidden1)
    v1 = jax.block_until_ready(mlp_critic_forward(obs1, params1, activation="tanh"))
    v1_ref = reference_forward(obs1, params1, activation="tanh")
    assert v1.shape == (B1,), f"bad output shape {v1.shape}"
    assert jnp.allclose(v1, v1_ref, atol=1e-4, rtol=1e-4), "tanh case mismatch"

    # Test 2: batch not a multiple of 128 -> exercises padding and a 2-step
    # "parallel" grid (v7x megacore path), with a different activation.
    B2, obs_dim2, hidden2 = 600, 48, (64, 64)
    key, k_obs2, k_p2 = jax.random.split(key, 3)
    obs2 = jax.random.normal(k_obs2, (B2, obs_dim2), jnp.float32)
    params2 = init_params(k_p2, obs_dim2, hidden2)
    v2 = jax.block_until_ready(mlp_critic_forward(obs2, params2, activation="relu"))
    v2_ref = reference_forward(obs2, params2, activation="relu")
    assert v2.shape == (B2,), f"bad output shape {v2.shape}"
    assert jnp.allclose(v2, v2_ref, atol=1e-4, rtol=1e-4), "relu case mismatch"

    print("KERNEL_OK")
</pallas_src>

<mosaic_0001>
module attributes {stable_mosaic.version = 11 : i64} {
  func.func @kernel(%arg0: i32, %arg1: memref<128x16xf32, #tpu.memory_space<vmem>>, %arg2: memref<16x32xf32, #tpu.memory_space<vmem>>, %arg3: memref<1x32xf32, #tpu.memory_space<vmem>>, %arg4: memref<32x32xf32, #tpu.memory_space<vmem>>, %arg5: memref<1x32xf32, #tpu.memory_space<vmem>>, %arg6: memref<1x32xf32, #tpu.memory_space<vmem>>, %arg7: memref<1x1xf32, #tpu.memory_space<smem>>, %arg8: memref<1x128xf32, #tpu.memory_space<vmem>>) attributes {dimension_semantics = [#tpu.dimension_semantics<parallel>], iteration_bounds = array<i64: 1>, scalar_prefetch = 0 : i64, scratch_operands = 0 : i64, tpu.core_type = #tpu.core_type<tc>, window_params = [{transform_indices = @transform_0, window_bounds = array<i64: 128, 16>}, {pipeline_mode = #tpu.pipeline_mode<synchronous>, transform_indices = @transform_1, window_bounds = array<i64: 16, 32>}, {pipeline_mode = #tpu.pipeline_mode<synchronous>, transform_indices = @transform_2, window_bounds = array<i64: 1, 32>}, {pipeline_mode = #tpu.pipeline_mode<synchronous>, transform_indices = @transform_3, window_bounds = array<i64: 32, 32>}, {pipeline_mode = #tpu.pipeline_mode<synchronous>, transform_indices = @transform_4, window_bounds = array<i64: 1, 32>}, {pipeline_mode = #tpu.pipeline_mode<synchronous>, transform_indices = @transform_5, window_bounds = array<i64: 1, 32>}, {transform_indices = @transform_6, window_bounds = array<i64: 1, 1>}, {transform_indices = @transform_7, window_bounds = array<i64: 1, 128>}]} {
    %c0 = arith.constant 0 : index
    %c0_0 = arith.constant 0 : index
    %0 = vector.load %arg1[%c0, %c0_0] : memref<128x16xf32, #tpu.memory_space<vmem>>, vector<128x16xf32>
    %c0_1 = arith.constant 0 : index
    %c0_2 = arith.constant 0 : index
    %1 = vector.load %arg2[%c0_1, %c0_2] : memref<16x32xf32, #tpu.memory_space<vmem>>, vector<16x32xf32>
    %c0_3 = arith.constant 0 : index
    %c0_4 = arith.constant 0 : index
    %2 = vector.load %arg3[%c0_3, %c0_4] : memref<1x32xf32, #tpu.memory_space<vmem>>, vector<1x32xf32>
    %cst = arith.constant dense<0.000000e+00> : vector<128x32xf32>
    %3 = tpu.matmul %0, %1, %cst {dimension_numbers = #tpu.dot_dimension_numbers<[1], [0], [0], [1], [0, 0, 1, 1], [], []>} : vector<128x16xf32>, vector<16x32xf32>, vector<128x32xf32> -> vector<128x32xf32>
    %4 = vector.broadcast %2 : vector<1x32xf32> to vector<128x32xf32>
    %5 = arith.addf %3, %4 : vector<128x32xf32>
    %6 = math.tanh %5 : vector<128x32xf32>
    %c0_5 = arith.constant 0 : index
    %c0_6 = arith.constant 0 : index
    %7 = vector.load %arg4[%c0_5, %c0_6] : memref<32x32xf32, #tpu.memory_space<vmem>>, vector<32x32xf32>
    %c0_7 = arith.constant 0 : index
    %c0_8 = arith.constant 0 : index
    %8 = vector.load %arg5[%c0_7, %c0_8] : memref<1x32xf32, #tpu.memory_space<vmem>>, vector<1x32xf32>
    %cst_9 = arith.constant dense<0.000000e+00> : vector<128x32xf32>
    %9 = tpu.matmul %6, %7, %cst_9 {dimension_numbers = #tpu.dot_dimension_numbers<[1], [0], [0], [1], [0, 0, 1, 1], [], []>} : vector<128x32xf32>, vector<32x32xf32>, vector<128x32xf32> -> vector<128x32xf32>
    %10 = vector.broadcast %8 : vector<1x32xf32> to vector<128x32xf32>
    %11 = arith.addf %9, %10 : vector<128x32xf32>
    %12 = math.tanh %11 : vector<128x32xf32>
    %c0_10 = arith.constant 0 : index
    %c0_11 = arith.constant 0 : index
    %13 = vector.load %arg6[%c0_10, %c0_11] : memref<1x32xf32, #tpu.memory_space<vmem>>, vector<1x32xf32>
    %cst_12 = arith.constant dense<0.000000e+00> : vector<1x128xf32>
    %14 = tpu.matmul %13, %12, %cst_12 {dimension_numbers = #tpu.dot_dimension_numbers<[1], [1], [0], [0], [0, 0, 1, 0], [], []>} : vector<1x32xf32>, vector<128x32xf32>, vector<1x128xf32> -> vector<1x128xf32>
    %c0_13 = arith.constant 0 : index
    %c0_14 = arith.constant 0 : index
    %15 = memref.load %arg7[%c0_13, %c0_14] : memref<1x1xf32, #tpu.memory_space<smem>>
    %16 = vector.broadcast %15 : f32 to vector<1x128xf32>
    %17 = arith.addf %14, %16 : vector<1x128xf32>
    %c0_15 = arith.constant 0 : index
    %c0_16 = arith.constant 0 : index
    %18 = vector.load %arg8[%c0_15, %c0_16] : memref<1x128xf32, #tpu.memory_space<vmem>>, vector<1x128xf32>
    tpu.vector_store %arg8[%c0_15, %c0_16], %17 {strides = array<i32>} : memref<1x128xf32, #tpu.memory_space<vmem>>, vector<1x128xf32>,
    return
  }
  func.func @transform_0(%arg0: i32) -> (i32, i32) {
    %c0_i32 = arith.constant 0 : i32
    %c0_i32_0 = arith.constant 0 : i32
    return %arg0, %c0_i32 : i32, i32
  }
  func.func @transform_1(%arg0: i32) -> (i32, i32) {
    %c0_i32 = arith.constant 0 : i32
    %c0_i32_0 = arith.constant 0 : i32
    %c0_i32_1 = arith.constant 0 : i32
    return %c0_i32, %c0_i32_0 : i32, i32
  }
  func.func @transform_2(%arg0: i32) -> (i32, i32) {
    %c0_i32 = arith.constant 0 : i32
    %c0_i32_0 = arith.constant 0 : i32
    %c0_i32_1 = arith.constant 0 : i32
    return %c0_i32, %c0_i32_0 : i32, i32
  }
  func.func @transform_3(%arg0: i32) -> (i32, i32) {
    %c0_i32 = arith.constant 0 : i32
    %c0_i32_0 = arith.constant 0 : i32
    %c0_i32_1 = arith.constant 0 : i32
    return %c0_i32, %c0_i32_0 : i32, i32
  }
  func.func @transform_4(%arg0: i32) -> (i32, i32) {
    %c0_i32 = arith.constant 0 : i32
    %c0_i32_0 = arith.constant 0 : i32
    %c0_i32_1 = arith.constant 0 : i32
    return %c0_i32, %c0_i32_0 : i32, i32
  }
  func.func @transform_5(%arg0: i32) -> (i32, i32) {
    %c0_i32 = arith.constant 0 : i32
    %c0_i32_0 = arith.constant 0 : i32
    %c0_i32_1 = arith.constant 0 : i32
    return %c0_i32, %c0_i32_0 : i32, i32
  }
  func.func @transform_6(%arg0: i32) -> (i32, i32) {
    %c0_i32 = arith.constant 0 : i32
    %c0_i32_0 = arith.constant 0 : i32
    %c0_i32_1 = arith.constant 0 : i32
    return %c0_i32, %c0_i32_0 : i32, i32
  }
  func.func @transform_7(%arg0: i32) -> (i32, i32) {
    %c0_i32 = arith.constant 0 : i32
    %c0_i32_0 = arith.constant 0 : i32
    return %c0_i32, %arg0 : i32, i32
  }
}

</mosaic_0001>

<llo_original>
// kernel: mlp_critic_forward.1
$region0: #{mlp_critic_forward.1}
  #allocation0 [shape = 'u32[]', space=smem, size = 0x4, offset = 0x4, fixed_abs, tag = 'smem constant byte address 0x4 - core index']
  #allocation1 [shape = 'u32[72,128]{1,0:T(1,128)}', space=vmem, size = 0x9000, scoped, tag = 'internal scratch']
  #allocation2 [shape = 'f32[1,1]{1,0:T(1,128)S(6)}', space=smem, size = 0x200, scoped, tag = 'scoped memory for mlp_critic_forward.1']
  %s0 = inlined_call_operand.vmem [shape: f32[128,16], index: 0, kind: input, shape index: {}]
  %s1 = inlined_call_operand.vmem [shape: f32[16,32], index: 1, kind: input, shape index: {}]
  %s2 = inlined_call_operand.vmem [shape: f32[1,32], index: 2, kind: input, shape index: {}]
  %s3 = inlined_call_operand.vmem [shape: f32[32,32], index: 3, kind: input, shape index: {}]
  %s4 = inlined_call_operand.vmem [shape: f32[1,32], index: 4, kind: input, shape index: {}]
  %s5 = inlined_call_operand.vmem [shape: f32[1,32], index: 5, kind: input, shape index: {}]
  %s6 = inlined_call_operand.<no memory space> [shape: f32[1,1], index: 6, kind: input, shape index: {}]
  %s7 = inlined_call_operand.vmem [shape: f32[1,128], index: 7, kind: output, shape index: {}]
  %s8 = sld [smem:[#allocation0]]
  $region38: #{mlp_critic_forward.1} parent=0
    _
  %s10 = ssub.s32 1, %s8
  %s11 = scalar_select 0, %s10, %s8
  %12 = sst [smem:[#allocation2]] %s6
  // Predicated region
  $region2: #{mlp_critic_forward.1} parent=0 // pred_check
    _
  $region3: #{mlp_critic_forward.1} parent=0 // pred_check_branch
    %14 = sbr.rel (0) target = $region5
  $region4: #{mlp_critic_forward.1} parent=0 // pred_region
    _
  $region5: #{mlp_critic_forward.1} parent=0 // pred_fallthru
    _
  // Predicated region
  $region6: #{mlp_critic_forward.1} parent=0 // pred_check
    _
  $region7: #{mlp_critic_forward.1} parent=0 // pred_check_branch
    %16 = sbr.rel (0) target = $region9
  $region8: #{mlp_critic_forward.1} parent=0 // pred_region
    _
  $region9: #{mlp_critic_forward.1} parent=0 // pred_fallthru
    _
  // Predicated region
  $region10: #{mlp_critic_forward.1} parent=0 // pred_check
    _
  $region11: #{mlp_critic_forward.1} parent=0 // pred_check_branch
    %18 = sbr.rel (0) target = $region13
  $region12: #{mlp_critic_forward.1} parent=0 // pred_region
    _
  $region13: #{mlp_critic_forward.1} parent=0 // pred_fallthru
    _
  // Predicated region
  $region14: #{mlp_critic_forward.1} parent=0 // pred_check
    _
  $region15: #{mlp_critic_forward.1} parent=0 // pred_check_branch
    %20 = sbr.rel (0) target = $region17
  $region16: #{mlp_critic_forward.1} parent=0 // pred_region
    _
  $region17: #{mlp_critic_forward.1} parent=0 // pred_fallthru
    _
  // Predicated region
  $region18: #{mlp_critic_forward.1} parent=0 // pred_check
    _
  $region19: #{mlp_critic_forward.1} parent=0 // pred_check_branch
    %22 = sbr.rel (0) target = $region21
  $region20: #{mlp_critic_forward.1} parent=0 // pred_region
    _
  $region21: #{mlp_critic_forward.1} parent=0 // pred_fallthru
    _
  // Predicated region
  $region22: #{mlp_critic_forward.1} parent=0 // pred_check
    _
  $region23: #{mlp_critic_forward.1} parent=0 // pred_check_branch
    %24 = sbr.rel (0) target = $region25
  $region24: #{mlp_critic_forward.1} parent=0 // pred_region
    _
  $region25: #{mlp_critic_forward.1} parent=0 // pred_fallthru
    _
  // Predicated region
  $region26: #{mlp_critic_forward.1} parent=0 // pred_check
    _
  $region27: #{mlp_critic_forward.1} parent=0 // pred_check_branch
    %26 = sbr.rel (0) target = $region29
  $region28: #{mlp_critic_forward.1} parent=0 // pred_region
    _
  $region29: #{mlp_critic_forward.1} parent=0 // pred_fallthru
    _
  %v27 = vld [vmem:[%s0] sm:$0xff]
  %v28 = vld [vmem:[%s0 + $0x8] sm:$0xff]
  %v29 = vld [vmem:[%s0 + $0x10] sm:$0xff]
  %v30 = vld [vmem:[%s0 + $0x18] sm:$0xff]
  %v31 = vld [vmem:[%s0 + $0x20] sm:$0xff]
  %v32 = vld [vmem:[%s0 + $0x28] sm:$0xff]
  %v33 = vld [vmem:[%s0 + $0x30] sm:$0xff]
  %v34 = vld [vmem:[%s0 + $0x38] sm:$0xff]
  %v35 = vld [vmem:[%s0 + $0x40] sm:$0xff]
  %v36 = vld [vmem:[%s0 + $0x48] sm:$0xff]
  %v37 = vld [vmem:[%s0 + $0x50] sm:$0xff]
  %v38 = vld [vmem:[%s0 + $0x58] sm:$0xff]
  %v39 = vld [vmem:[%s0 + $0x60] sm:$0xff]
  %v40 = vld [vmem:[%s0 + $0x68] sm:$0xff]
  %v41 = vld [vmem:[%s0 + $0x70] sm:$0xff]
  %v42 = vld [vmem:[%s0 + $0x78] sm:$0xff]
  %v43 = vld [vmem:[%s1] sm:$0xff]
  %v44 = vld [vmem:[%s1 + $0x8] sm:$0xff]
  %v45 = vld [vmem:[%s2] sm:$0x1]
  %v47 = vperm.slane %v45, 0
  %vm49 = vcmask 130048
  %v51 = vsel %vm49, %v27, 0
  %v54 = vsel %vm49, %v28, 0
  %v57 = vsel %vm49, %v29, 0
  %v60 = vsel %vm49, %v30, 0
  %v63 = vsel %vm49, %v31, 0
  %v66 = vsel %vm49, %v32, 0
  %v69 = vsel %vm49, %v33, 0
  %v72 = vsel %vm49, %v34, 0
  %v75 = vsel %vm49, %v35, 0
  %v78 = vsel %vm49, %v36, 0
  %v81 = vsel %vm49, %v37, 0
  %v84 = vsel %vm49, %v38, 0
  %v87 = vsel %vm49, %v39, 0
  %v90 = vsel %vm49, %v40, 0
  %v93 = vsel %vm49, %v41, 0
  %v96 = vsel %vm49, %v42, 0
  %98 = vmatpush.msra.mxu0 0.0
  %99 = vmatpush.msra.mxu0 0.0
  %100 = vmatpush.msra.mxu0 0.0
  %101 = vmatpush.msra.mxu0 0.0
  %102 = vmatpush.msra.mxu0 0.0
  %103 = vmatpush.msra.mxu0 0.0
  %104 = vmatpush.msra.mxu0 0.0
  %105 = vmatpush.msra.mxu0 0.0
  %106 = vmatpush.msra.mxu0 0.0
  %107 = vmatpush.msra.mxu0 0.0
  %108 = vmatpush.msra.mxu0 0.0
  %109 = vmatpush.msra.mxu0 0.0
  %110 = vmatpush.msra.mxu0 0.0
  %111 = vmatpush.msra.mxu0 0.0
  %112 = vmatpush.msra.mxu0 %v44
  %113 = vmatpush.msra.mxu0 %v43
  %114 = vmatmul.f32.gmra.mxu0 %v51
  %v115 = vpop.f32.mrf.mxu0
  %v116 = vadd.f32 %v47, %v115
  %117 = vmatmul.f32.gmra.mxu0 %v54
  %v118 = vpop.f32.mrf.mxu0
  %v119 = vadd.f32 %v47, %v118
  %120 = vmatmul.f32.gmra.mxu0 %v57
  %v121 = vpop.f32.mrf.mxu0
  %v122 = vadd.f32 %v47, %v121
  %123 = vmatmul.f32.gmra.mxu0 %v60
  %v124 = vpop.f32.mrf.mxu0
  %v125 = vadd.f32 %v47, %v124
  %126 = vmatmul.f32.gmra.mxu0 %v63
  %v127 = vpop.f32.mrf.mxu0
  %v128 = vadd.f32 %v47, %v127
  %129 = vmatmul.f32.gmra.mxu0 %v66
  %v130 = vpop.f32.mrf.mxu0
  %v131 = vadd.f32 %v47, %v130
  %132 = vmatmul.f32.gmra.mxu0 %v69
  %v133 = vpop.f32.mrf.mxu0
  %v134 = vadd.f32 %v47, %v133
  %135 = vmatmul.f32.gmra.mxu0 %v72
  %v136 = vpop.f32.mrf.mxu0
  %v137 = vadd.f32 %v47, %v136
  %138 = vmatmul.f32.gmra.mxu0 %v75
  %v139 = vpop.f32.mrf.mxu0
  %v140 = vadd.f32 %v47, %v139
  %141 = vmatmul.f32.gmra.mxu0 %v78
  %v142 = vpop.f32.mrf.mxu0
  %v143 = vadd.f32 %v47, %v142
  %144 = vmatmul.f32.gmra.mxu0 %v81
  %v145 = vpop.f32.mrf.mxu0
  %v146 = vadd.f32 %v47, %v145
  %147 = vmatmul.f32.gmra.mxu0 %v84
  %v148 = vpop.f32.mrf.mxu0
  %v149 = vadd.f32 %v47, %v148
  %150 = vmatmul.f32.gmra.mxu0 %v87
  %v151 = vpop.f32.mrf.mxu0
  %v152 = vadd.f32 %v47, %v151
  %153 = vmatmul.f32.gmra.mxu0 %v90
  %v154 = vpop.f32.mrf.mxu0
  %v155 = vadd.f32 %v47, %v154
  %156 = vmatmul.f32.gmra.mxu0 %v93
  %v157 = vpop.f32.mrf.mxu0
  %v158 = vadd.f32 %v47, %v157
  %159 = vmatmul.f32.gmra.mxu0 %v96
  %v160 = vpop.f32.mrf.mxu0
  %v161 = vadd.f32 %v47, %v160
  %162 = vdwg.mxu0
  %v163 = vtanh.pop %v116
  %v164 = vtanh.pop %v119
  %v165 = vtanh.pop %v122
  %v166 = vtanh.pop %v125
  %v167 = vtanh.pop %v128
  %v168 = vtanh.pop %v131
  %v169 = vtanh.pop %v134
  %v170 = vtanh.pop %v137
  %v171 = vtanh.pop %v140
  %v172 = vtanh.pop %v143
  %v173 = vtanh.pop %v146
  %v174 = vtanh.pop %v149
  %v175 = vtanh.pop %v152
  %v176 = vtanh.pop %v155
  %v177 = vtanh.pop %v158
  %v178 = vtanh.pop %v161
  %v179 = vld [vmem:[%s3] sm:$0xff]
  %v180 = vld [vmem:[%s3 + $0x8] sm:$0xff]
  %v181 = vld [vmem:[%s3 + $0x10] sm:$0xff]
  %v182 = vld [vmem:[%s3 + $0x18] sm:$0xff]
  %v183 = vld [vmem:[%s4] sm:$0x1]
  %v185 = vperm.slane %v183, 0
  %vm187 = vcmask 261120
  %v189 = vsel %vm187, %v163, 0
  %v192 = vsel %vm187, %v164, 0
  %v195 = vsel %vm187, %v165, 0
  %v198 = vsel %vm187, %v166, 0
  %v201 = vsel %vm187, %v167, 0
  %v204 = vsel %vm187, %v168, 0
  %v207 = vsel %vm187, %v169, 0
  %v210 = vsel %vm187, %v170, 0
  %v213 = vsel %vm187, %v171, 0
  %v216 = vsel %vm187, %v172, 0
  %v219 = vsel %vm187, %v173, 0
  %v222 = vsel %vm187, %v174, 0
  %v225 = vsel %vm187, %v175, 0
  %v228 = vsel %vm187, %v176, 0
  %v231 = vsel %vm187, %v177, 0
  %v234 = vsel %vm187, %v178, 0
  %236 = vmatpush.msra.mxu0 0.0
  %237 = vmatpush.msra.mxu0 0.0
  %238 = vmatpush.msra.mxu0 0.0
  %239 = vmatpush.msra.mxu0 0.0
  %240 = vmatpush.msra.mxu0 0.0
  %241 = vmatpush.msra.mxu0 0.0
  %242 = vmatpush.msra.mxu0 0.0
  %243 = vmatpush.msra.mxu0 0.0
  %244 = vmatpush.msra.mxu0 0.0
  %245 = vmatpush.msra.mxu0 0.0
  %246 = vmatpush.msra.mxu0 0.0
  %247 = vmatpush.msra.mxu0 0.0
  %248 = vmatpush.msra.mxu0 %v182
  %249 = vmatpush.msra.mxu0 %v181
  %250 = vmatpush.msra.mxu0 %v180
  %251 = vmatpush.msra.mxu0 %v179
  %252 = vmatmul.f32.gmra.mxu0 %v189
  %v253 = vpop.f32.mrf.mxu0
  %v254 = vadd.f32 %v185, %v253
  %255 = vmatmul.f32.gmra.mxu0 %v192
  %v256 = vpop.f32.mrf.mxu0
  %v257 = vadd.f32 %v185, %v256
  %258 = vmatmul.f32.gmra.mxu0 %v195
  %v259 = vpop.f32.mrf.mxu0
  %v260 = vadd.f32 %v185, %v259
  %261 = vmatmul.f32.gmra.mxu0 %v198
  %v262 = vpop.f32.mrf.mxu0
  %v263 = vadd.f32 %v185, %v262
  %264 = vmatmul.f32.gmra.mxu0 %v201
  %v265 = vpop.f32.mrf.mxu0
  %v266 = vadd.f32 %v185, %v265
  %267 = vmatmul.f32.gmra.mxu0 %v204
  %v268 = vpop.f32.mrf.mxu0
  %v269 = vadd.f32 %v185, %v268
  %270 = vmatmul.f32.gmra.mxu0 %v207
  %v271 = vpop.f32.mrf.mxu0
  %v272 = vadd.f32 %v185, %v271
  %273 = vmatmul.f32.gmra.mxu0 %v210
  %v274 = vpop.f32.mrf.mxu0
  %v275 = vadd.f32 %v185, %v274
  %276 = vmatmul.f32.gmra.mxu0 %v213
  %v277 = vpop.f32.mrf.mxu0
  %v278 = vadd.f32 %v185, %v277
  %279 = vmatmul.f32.gmra.mxu0 %v216
  %v280 = vpop.f32.mrf.mxu0
  %v281 = vadd.f32 %v185, %v280
  %282 = vmatmul.f32.gmra.mxu0 %v219
  %v283 = vpop.f32.mrf.mxu0
  %v284 = vadd.f32 %v185, %v283
  %285 = vmatmul.f32.gmra.mxu0 %v222
  %v286 = vpop.f32.mrf.mxu0
  %v287 = vadd.f32 %v185, %v286
  %288 = vmatmul.f32.gmra.mxu0 %v225
  %v289 = vpop.f32.mrf.mxu0
  %v290 = vadd.f32 %v185, %v289
  %291 = vmatmul.f32.gmra.mxu0 %v228
  %v292 = vpop.f32.mrf.mxu0
  %v293 = vadd.f32 %v185, %v292
  %294 = vmatmul.f32.gmra.mxu0 %v231
  %v295 = vpop.f32.mrf.mxu0
  %v296 = vadd.f32 %v185, %v295
  %297 = vmatmul.f32.gmra.mxu0 %v234
  %v298 = vpop.f32.mrf.mxu0
  %v299 = vadd.f32 %v185, %v298
  %300 = vdwg.mxu0
  %v301 = vtanh.pop %v254
  %v302 = vtanh.pop %v257
  %v303 = vtanh.pop %v260
  %v304 = vtanh.pop %v263
  %v305 = vtanh.pop %v266
  %v306 = vtanh.pop %v269
  %v307 = vtanh.pop %v272
  %v308 = vtanh.pop %v275
  %v309 = vtanh.pop %v278
  %v310 = vtanh.pop %v281
  %v311 = vtanh.pop %v284
  %v312 = vtanh.pop %v287
  %v313 = vtanh.pop %v290
  %v314 = vtanh.pop %v293
  %v315 = vtanh.pop %v296
  %v316 = vtanh.pop %v299
  %v317 = vld [vmem:[%s5] sm:$0x1]
  %s318 = sld [smem:[#allocation2]]
  %v319 = vstv %s318
  %v321 = vsel %vm187, %v317, 0
  %v324 = vsel %vm187, %v301, 0
  %v327 = vsel %vm187, %v302, 0
  %v330 = vsel %vm187, %v303, 0
  %v333 = vsel %vm187, %v304, 0
  %v336 = vsel %vm187, %v305, 0
  %v339 = vsel %vm187, %v306, 0
  %v342 = vsel %vm187, %v307, 0
  %v345 = vsel %vm187, %v308, 0
  %v348 = vsel %vm187, %v309, 0
  %v351 = vsel %vm187, %v310, 0
  %v354 = vsel %vm187, %v311, 0
  %v357 = vsel %vm187, %v312, 0
  %v360 = vsel %vm187, %v313, 0
  %v363 = vsel %vm187, %v314, 0
  %v366 = vsel %vm187, %v315, 0
  %v369 = vsel %vm187, %v316, 0
  %371 = vmatpush.xpose.msra.mxu0 %v369
  %372 = vmatpush.xpose.msra.mxu0 %v366
  %373 = vmatpush.xpose.msra.mxu0 %v363
  %374 = vmatpush.xpose.msra.mxu0 %v360
  %375 = vmatpush.xpose.msra.mxu0 %v357
  %376 = vmatpush.xpose.msra.mxu0 %v354
  %377 = vmatpush.xpose.msra.mxu0 %v351
  %378 = vmatpush.xpose.msra.mxu0 %v348
  %379 = vmatpush.xpose.msra.mxu0 %v345
  %380 = vmatpush.xpose.msra.mxu0 %v342
  %381 = vmatpush.xpose.msra.mxu0 %v339
  %382 = vmatpush.xpose.msra.mxu0 %v336
  %383 = vmatpush.xpose.msra.mxu0 %v333
  %384 = vmatpush.xpose.msra.mxu0 %v330
  %385 = vmatpush.xpose.msra.mxu0 %v327
  %386 = vmatpush.xpose.msra.mxu0 %v324
  %387 = vmatmul.f32.gmra.mxu0 %v321
  %v388 = vpop.f32.mrf.mxu0
  %v389 = vadd.f32 %v319, %v388
  %390 = vdwg.mxu0
  %391 = vst [vmem:[%s7] sm:$0x1] %v389
  // Predicated region
  $region30: #{mlp_critic_forward.1} parent=0 // pred_check
    _
  $region31: #{mlp_critic_forward.1} parent=0 // pred_check_branch
    %393 = sbr.rel (0) target = $region33
  $region32: #{mlp_critic_forward.1} parent=0 // pred_region
    _
  $region33: #{mlp_critic_forward.1} parent=0 // pred_fallthru
    _
  // Predicated region
  $region34: #{mlp_critic_forward.1} parent=0 // pred_check
    _
  $region35: #{mlp_critic_forward.1} parent=0 // pred_check_branch
    %395 = sbr.rel (0) target = $region37
  $region36: #{mlp_critic_forward.1} parent=0 // pred_region
    _
  $region37: #{mlp_critic_forward.1} parent=0 // pred_fallthru
    _

</llo_original>
